<compile_context>
chip_gen: v5e
topology: v5e:2x2
jax: 0.10.0
libtpu: 0.0.40
codegen_flags: <defaults>
</compile_context>

<pallas_src>
import functools

import jax
import jax.numpy as jnp
from jax.experimental import pallas as pl
from jax.experimental.pallas import tpu as pltpu

# Dropout rates (module-level globals `dropout1` / `dropout2` in the original
# d2l code).
DROPOUT1 = 0.2
DROPOUT2 = 0.5


def _round_up(x, m):
    return ((x + m - 1) // m) * m


def _random_u32(shape, tile_seed, salt):
    """Counter-based uint32 hash PRNG (lowbias32) on the VPU integer path.

    iota is materialized as int32 (always supported by Mosaic) and converted
    to uint32 (value-preserving for the non-negative counter range)."""
    rows = jax.lax.broadcasted_iota(jnp.int32, shape, 0).astype(jnp.uint32)
    cols = jax.lax.broadcasted_iota(jnp.int32, shape, 1).astype(jnp.uint32)
    x = rows * jnp.uint32(shape[1]) + cols
    x = x ^ (tile_seed + jnp.uint32(salt))
    x = (x ^ (x >> 16)) * jnp.uint32(0x7FEB352D)
    x = (x ^ (x >> 15)) * jnp.uint32(0x846CA68B)
    return x ^ (x >> 16)


def _dropout(h, p, rbits):
    """Inverted dropout in the integer domain: keep iff rbits >= p * 2^32.

    Matches the PyTorch dropout_layer semantics (keep prob = 1-p, scale by
    1/(1-p)); the RNG stream necessarily differs from torch.rand."""
    if p == 0.0:
        return h
    if p == 1.0:
        return jnp.zeros_like(h)
    thr = jnp.uint32(int(p * (1 << 32)))
    return jnp.where(rbits >= thr, h * (1.0 / (1.0 - p)), 0.0)


def mlp_kernel(*refs, training):
    if training:
        (seed_ref, x_ref, w1_ref, b1_ref, w2_ref, b2_ref, w3_ref, b3_ref,
         o_ref) = refs
        # Fold the grid index into the seed so every batch tile gets an
        # independent dropout mask.
        tile_seed = (seed_ref[0].astype(jnp.uint32)
                     + pl.program_id(0).astype(jnp.uint32)
                     * jnp.uint32(0x9E3779B1))
    else:
        (x_ref, w1_ref, b1_ref, w2_ref, b2_ref, w3_ref, b3_ref, o_ref) = refs

    # ---- lin1 + ReLU (+ dropout p=0.2) : bf16 operands, f32 MXU accumulate.
    h1 = jnp.dot(x_ref[...], w1_ref[...],
                 preferred_element_type=jnp.float32) + b1_ref[...]
    h1 = jnp.maximum(h1, 0.0)
    if training:
        h1 = _dropout(h1, DROPOUT1,
                      _random_u32(h1.shape, tile_seed, 0x243F6A88))

    # ---- lin2 + ReLU (+ dropout p=0.5)
    h2 = jnp.dot(h1.astype(w2_ref.dtype), w2_ref[...],
                 preferred_element_type=jnp.float32) + b2_ref[...]
    h2 = jnp.maximum(h2, 0.0)
    if training:
        h2 = _dropout(h2, DROPOUT2,
                      _random_u32(h2.shape, tile_seed, 0x85A308D3))

    # ---- lin3 (no activation), lane-dense store.
    out = jnp.dot(h2.astype(w3_ref.dtype), w3_ref[...],
                  preferred_element_type=jnp.float32) + b3_ref[...]
    o_ref[...] = out.astype(o_ref.dtype)


def net_forward(x, params, *, num_inputs, training=True, seed=0, block_m=512):
    """Forward pass of Net: reshape -> lin1 -> relu -> drop(0.2) -> lin2 ->
    relu -> drop(0.5) -> lin3.  Reshape / padding / dtype plumbing stays in
    plain JAX; the hot path is one fused, batch-tiled Pallas kernel."""
    w1, b1, w2, b2, w3, b3 = params
    x2d = x.reshape((-1, num_inputs)).astype(jnp.bfloat16)
    batch = x2d.shape[0]
    h1d = w1.shape[1]
    h2d = w2.shape[1]
    num_outputs = w3.shape[1]

    # Lane-dense output block: pad the final layer's columns to >=128.
    nout_pad = _round_up(max(num_outputs, 128), 128)
    w1b = w1.astype(jnp.bfloat16)
    w2b = w2.astype(jnp.bfloat16)
    w3b = jnp.pad(w3.astype(jnp.bfloat16),
                  ((0, 0), (0, nout_pad - num_outputs)))
    b1r = b1.reshape(1, -1).astype(jnp.float32)
    b2r = b2.reshape(1, -1).astype(jnp.float32)
    b3r = jnp.pad(b3.reshape(1, -1).astype(jnp.float32),
                  ((0, 0), (0, nout_pad - num_outputs)))

    # Batch tiling: tm rows per grid step (multiple of 16 for bf16 sublane
    # packing); pad ragged batches up to a whole number of tiles.
    tm = min(block_m, _round_up(batch, 16))
    batch_pad = _round_up(batch, tm)
    if batch_pad != batch:
        x2d = jnp.pad(x2d, ((0, batch_pad - batch), (0, 0)))
    grid = (batch_pad // tm,)

    const = lambda i, *_: (0, 0)   # weights/biases: VMEM-resident across grid
    row = lambda i, *_: (i, 0)     # x / out: one batch tile per grid step
    in_specs = [
        pl.BlockSpec((tm, num_inputs), row),
        pl.BlockSpec((num_inputs, h1d), const),
        pl.BlockSpec((1, h1d), const),
        pl.BlockSpec((h1d, h2d), const),
        pl.BlockSpec((1, h2d), const),
        pl.BlockSpec((h2d, nout_pad), const),
        pl.BlockSpec((1, nout_pad), const),
    ]
    out_spec = pl.BlockSpec((tm, nout_pad), row)

    args = (x2d, w1b, b1r, w2b, b2r, w3b, b3r)
    num_prefetch = 0
    if training:
        args = (jnp.array([seed], dtype=jnp.int32),) + args
        num_prefetch = 1

    out = pl.pallas_call(
        functools.partial(mlp_kernel, training=training),
        out_shape=jax.ShapeDtypeStruct((batch_pad, nout_pad), jnp.float32),
        grid_spec=pltpu.PrefetchScalarGridSpec(
            num_scalar_prefetch=num_prefetch,
            grid=grid,
            in_specs=in_specs,
            out_specs=out_spec,
        ),
        compiler_params=pltpu.CompilerParams(
            dimension_semantics=("parallel",)),
    )(*args)
    return out[:batch, :num_outputs]


def init_params(key, num_inputs, num_hiddens1, num_hiddens2, num_outputs):
    """Deterministic synthetic init (roughly matching nn.Linear's uniform
    fan-in scaling). Weights stored as (in, out)."""
    ks = jax.random.split(key, 6)

    def lin(kw, kb, fan_in, fan_out):
        bound = 1.0 / jnp.sqrt(fan_in)
        w = jax.random.uniform(kw, (fan_in, fan_out), jnp.float32, -bound, bound)
        b = jax.random.uniform(kb, (fan_out,), jnp.float32, -bound, bound)
        return w, b

    w1, b1 = lin(ks[0], ks[1], num_inputs, num_hiddens1)
    w2, b2 = lin(ks[2], ks[3], num_hiddens1, num_hiddens2)
    w3, b3 = lin(ks[4], ks[5], num_hiddens2, num_outputs)
    return (w1, b1, w2, b2, w3, b3)


if __name__ == "__main__":
    # Small shapes consistent with the MLP forward.
    batch = 8
    num_inputs = 32
    num_hiddens1 = 128
    num_hiddens2 = 128
    num_outputs = 16

    key = jax.random.PRNGKey(0)
    kp, kx = jax.random.split(key)
    params = init_params(kp, num_inputs, num_hiddens1, num_hiddens2, num_outputs)

    # Input arrives in an arbitrary shape; forward flattens to (-1, num_inputs).
    x = jax.random.normal(kx, (batch, 2, num_inputs // 2), dtype=jnp.float32)

    # Training path (dropout on): shape + finiteness check.
    out = net_forward(x, params, num_inputs=num_inputs, training=True, seed=1234)
    out = jax.block_until_ready(out)
    assert out.shape == (batch, num_outputs), out.shape
    assert bool(jnp.all(jnp.isfinite(out)))

    # Eval path (no dropout): compare against a plain-JAX reference using the
    # same bf16 operand rounding.
    def ref_fwd(xin):
        w1, b1, w2, b2, w3, b3 = params
        f = lambda a: a.astype(jnp.bfloat16).astype(jnp.float32)
        xr = f(xin.reshape((-1, num_inputs)))
        h1 = jnp.maximum(xr @ f(w1) + b1, 0.0)
        h2 = jnp.maximum(f(h1) @ f(w2) + b2, 0.0)
        return f(h2) @ f(w3) + b3

    out_eval = jax.block_until_ready(
        net_forward(x, params, num_inputs=num_inputs, training=False))
    assert jnp.allclose(out_eval, ref_fwd(x), atol=2e-2, rtol=2e-2), (
        float(jnp.max(jnp.abs(out_eval - ref_fwd(x)))))

    # Exercise a multi-tile grid with a ragged batch (padding + slicing path),
    # both eval and training (per-tile dropout seeds).
    batch2 = 40
    x2 = jax.random.normal(jax.random.PRNGKey(1), (batch2, num_inputs),
                           dtype=jnp.float32)
    out2 = jax.block_until_ready(
        net_forward(x2, params, num_inputs=num_inputs, training=False,
                    block_m=16))
    assert out2.shape == (batch2, num_outputs), out2.shape
    assert jnp.allclose(out2, ref_fwd(x2), atol=2e-2, rtol=2e-2)

    out3 = jax.block_until_ready(
        net_forward(x2, params, num_inputs=num_inputs, training=True,
                    seed=7, block_m=16))
    assert out3.shape == (batch2, num_outputs), out3.shape
    assert bool(jnp.all(jnp.isfinite(out3)))

    print("KERNEL_OK")
</pallas_src>

<mosaic_0001>
module attributes {stable_mosaic.version = 11 : i64} {
  func.func @mlp_kernel(%arg0: i32, %arg1: memref<1xi32, #tpu.memory_space<smem>>, %arg2: memref<16x32xbf16, #tpu.memory_space<vmem>>, %arg3: memref<32x128xbf16, #tpu.memory_space<vmem>>, %arg4: memref<1x128xf32, #tpu.memory_space<vmem>>, %arg5: memref<128x128xbf16, #tpu.memory_space<vmem>>, %arg6: memref<1x128xf32, #tpu.memory_space<vmem>>, %arg7: memref<128x128xbf16, #tpu.memory_space<vmem>>, %arg8: memref<1x128xf32, #tpu.memory_space<vmem>>, %arg9: memref<16x128xf32, #tpu.memory_space<vmem>>) attributes {dimension_semantics = [#tpu.dimension_semantics<parallel>], iteration_bounds = array<i64: 1>, scalar_prefetch = 1 : i64, scratch_operands = 0 : i64, tpu.core_type = #tpu.core_type<tc>, window_params = [{transform_indices = @transform_0, window_bounds = array<i64: 16, 32>}, {pipeline_mode = #tpu.pipeline_mode<synchronous>, transform_indices = @transform_1, window_bounds = array<i64: 32, 128>}, {pipeline_mode = #tpu.pipeline_mode<synchronous>, transform_indices = @transform_2, window_bounds = array<i64: 1, 128>}, {pipeline_mode = #tpu.pipeline_mode<synchronous>, transform_indices = @transform_3, window_bounds = array<i64: 128, 128>}, {pipeline_mode = #tpu.pipeline_mode<synchronous>, transform_indices = @transform_4, window_bounds = array<i64: 1, 128>}, {pipeline_mode = #tpu.pipeline_mode<synchronous>, transform_indices = @transform_5, window_bounds = array<i64: 128, 128>}, {pipeline_mode = #tpu.pipeline_mode<synchronous>, transform_indices = @transform_6, window_bounds = array<i64: 1, 128>}, {transform_indices = @transform_7, window_bounds = array<i64: 16, 128>}]} {
    %c0 = arith.constant 0 : index
    %0 = memref.load %arg1[%c0] : memref<1xi32, #tpu.memory_space<smem>>
    %c-1640531535_i32 = arith.constant -1640531535 : i32
    %1 = arith.muli %arg0, %c-1640531535_i32 : i32
    %2 = arith.addi %0, %1 : i32
    %c0_0 = arith.constant 0 : index
    %c0_1 = arith.constant 0 : index
    %3 = vector.load %arg2[%c0_0, %c0_1] : memref<16x32xbf16, #tpu.memory_space<vmem>>, vector<16x32xbf16>
    %c0_2 = arith.constant 0 : index
    %c0_3 = arith.constant 0 : index
    %4 = vector.load %arg3[%c0_2, %c0_3] : memref<32x128xbf16, #tpu.memory_space<vmem>>, vector<32x128xbf16>
    %cst = arith.constant dense<0.000000e+00> : vector<16x128xf32>
    %5 = tpu.matmul %3, %4, %cst {dimension_numbers = #tpu.dot_dimension_numbers<[1], [0], [0], [1], [0, 0, 1, 1], [], []>} : vector<16x32xbf16>, vector<32x128xbf16>, vector<16x128xf32> -> vector<16x128xf32>
    %c0_4 = arith.constant 0 : index
    %c0_5 = arith.constant 0 : index
    %6 = vector.load %arg4[%c0_4, %c0_5] : memref<1x128xf32, #tpu.memory_space<vmem>>, vector<1x128xf32>
    %7 = vector.broadcast %6 : vector<1x128xf32> to vector<16x128xf32>
    %8 = arith.addf %5, %7 : vector<16x128xf32>
    %cst_6 = arith.constant 0.000000e+00 : f32
    %9 = vector.broadcast %cst_6 : f32 to vector<16x128xf32>
    %10 = arith.maximumf %8, %9 : vector<16x128xf32>
    %11 = tpu.iota {dimensions = array<i32: 0>} : vector<16x128xi32>
    %12 = tpu.iota {dimensions = array<i32: 1>} : vector<16x128xi32>
    %c128_i32 = arith.constant 128 : i32
    %13 = vector.broadcast %c128_i32 : i32 to vector<16x128xi32>
    %14 = arith.muli %11, %13 : vector<16x128xi32>
    %15 = arith.addi %14, %12 : vector<16x128xi32>
    %c608135816_i32 = arith.constant 608135816 : i32
    %16 = arith.addi %2, %c608135816_i32 : i32
    %17 = vector.broadcast %16 : i32 to vector<16x128xi32>
    %18 = arith.xori %15, %17 : vector<16x128xi32>
    %c16_i32 = arith.constant 16 : i32
    %19 = vector.broadcast %c16_i32 : i32 to vector<16x128xi32>
    %20 = arith.shrui %18, %19 : vector<16x128xi32>
    %21 = arith.xori %18, %20 : vector<16x128xi32>
    %c2146121005_i32 = arith.constant 2146121005 : i32
    %22 = vector.broadcast %c2146121005_i32 : i32 to vector<16x128xi32>
    %23 = arith.muli %21, %22 : vector<16x128xi32>
    %c15_i32 = arith.constant 15 : i32
    %24 = vector.broadcast %c15_i32 : i32 to vector<16x128xi32>
    %25 = arith.shrui %23, %24 : vector<16x128xi32>
    %26 = arith.xori %23, %25 : vector<16x128xi32>
    %c-2073254261_i32 = arith.constant -2073254261 : i32
    %27 = vector.broadcast %c-2073254261_i32 : i32 to vector<16x128xi32>
    %28 = arith.muli %26, %27 : vector<16x128xi32>
    %c16_i32_7 = arith.constant 16 : i32
    %29 = vector.broadcast %c16_i32_7 : i32 to vector<16x128xi32>
    %30 = arith.shrui %28, %29 : vector<16x128xi32>
    %31 = arith.xori %28, %30 : vector<16x128xi32>
    %c858993459_i32 = arith.constant 858993459 : i32
    %32 = vector.broadcast %c858993459_i32 : i32 to vector<16x128xi32>
    %33 = arith.cmpi uge, %31, %32 : vector<16x128xi32>
    %cst_8 = arith.constant 1.250000e+00 : f32
    %34 = vector.broadcast %cst_8 : f32 to vector<16x128xf32>
    %35 = arith.mulf %10, %34 : vector<16x128xf32>
    %cst_9 = arith.constant 0.000000e+00 : f32
    %36 = vector.broadcast %cst_9 : f32 to vector<16x128xf32>
    %37 = arith.select %33, %35, %36 : vector<16x128xi1>, vector<16x128xf32>
    %38 = arith.truncf %37 : vector<16x128xf32> to vector<16x128xbf16>
    %c0_10 = arith.constant 0 : index
    %c0_11 = arith.constant 0 : index
    %39 = vector.load %arg5[%c0_10, %c0_11] : memref<128x128xbf16, #tpu.memory_space<vmem>>, vector<128x128xbf16>
    %cst_12 = arith.constant dense<0.000000e+00> : vector<16x128xf32>
    %40 = tpu.matmul %38, %39, %cst_12 {dimension_numbers = #tpu.dot_dimension_numbers<[1], [0], [0], [1], [0, 0, 1, 1], [], []>} : vector<16x128xbf16>, vector<128x128xbf16>, vector<16x128xf32> -> vector<16x128xf32>
    %c0_13 = arith.constant 0 : index
    %c0_14 = arith.constant 0 : index
    %41 = vector.load %arg6[%c0_13, %c0_14] : memref<1x128xf32, #tpu.memory_space<vmem>>, vector<1x128xf32>
    %42 = vector.broadcast %41 : vector<1x128xf32> to vector<16x128xf32>
    %43 = arith.addf %40, %42 : vector<16x128xf32>
    %cst_15 = arith.constant 0.000000e+00 : f32
    %44 = vector.broadcast %cst_15 : f32 to vector<16x128xf32>
    %45 = arith.maximumf %43, %44 : vector<16x128xf32>
    %46 = tpu.iota {dimensions = array<i32: 0>} : vector<16x128xi32>
    %47 = tpu.iota {dimensions = array<i32: 1>} : vector<16x128xi32>
    %c128_i32_16 = arith.constant 128 : i32
    %48 = vector.broadcast %c128_i32_16 : i32 to vector<16x128xi32>
    %49 = arith.muli %46, %48 : vector<16x128xi32>
    %50 = arith.addi %49, %47 : vector<16x128xi32>
    %c-2052912941_i32 = arith.constant -2052912941 : i32
    %51 = arith.addi %2, %c-2052912941_i32 : i32
    %52 = vector.broadcast %51 : i32 to vector<16x128xi32>
    %53 = arith.xori %50, %52 : vector<16x128xi32>
    %c16_i32_17 = arith.constant 16 : i32
    %54 = vector.broadcast %c16_i32_17 : i32 to vector<16x128xi32>
    %55 = arith.shrui %53, %54 : vector<16x128xi32>
    %56 = arith.xori %53, %55 : vector<16x128xi32>
    %c2146121005_i32_18 = arith.constant 2146121005 : i32
    %57 = vector.broadcast %c2146121005_i32_18 : i32 to vector<16x128xi32>
    %58 = arith.muli %56, %57 : vector<16x128xi32>
    %c15_i32_19 = arith.constant 15 : i32
    %59 = vector.broadcast %c15_i32_19 : i32 to vector<16x128xi32>
    %60 = arith.shrui %58, %59 : vector<16x128xi32>
    %61 = arith.xori %58, %60 : vector<16x128xi32>
    %c-2073254261_i32_20 = arith.constant -2073254261 : i32
    %62 = vector.broadcast %c-2073254261_i32_20 : i32 to vector<16x128xi32>
    %63 = arith.muli %61, %62 : vector<16x128xi32>
    %c16_i32_21 = arith.constant 16 : i32
    %64 = vector.broadcast %c16_i32_21 : i32 to vector<16x128xi32>
    %65 = arith.shrui %63, %64 : vector<16x128xi32>
    %66 = arith.xori %63, %65 : vector<16x128xi32>
    %c-2147483648_i32 = arith.constant -2147483648 : i32
    %67 = vector.broadcast %c-2147483648_i32 : i32 to vector<16x128xi32>
    %68 = arith.cmpi uge, %66, %67 : vector<16x128xi32>
    %cst_22 = arith.constant 2.000000e+00 : f32
    %69 = vector.broadcast %cst_22 : f32 to vector<16x128xf32>
    %70 = arith.mulf %45, %69 : vector<16x128xf32>
    %cst_23 = arith.constant 0.000000e+00 : f32
    %71 = vector.broadcast %cst_23 : f32 to vector<16x128xf32>
    %72 = arith.select %68, %70, %71 : vector<16x128xi1>, vector<16x128xf32>
    %73 = arith.truncf %72 : vector<16x128xf32> to vector<16x128xbf16>
    %c0_24 = arith.constant 0 : index
    %c0_25 = arith.constant 0 : index
    %74 = vector.load %arg7[%c0_24, %c0_25] : memref<128x128xbf16, #tpu.memory_space<vmem>>, vector<128x128xbf16>
    %cst_26 = arith.constant dense<0.000000e+00> : vector<16x128xf32>
    %75 = tpu.matmul %73, %74, %cst_26 {dimension_numbers = #tpu.dot_dimension_numbers<[1], [0], [0], [1], [0, 0, 1, 1], [], []>} : vector<16x128xbf16>, vector<128x128xbf16>, vector<16x128xf32> -> vector<16x128xf32>
    %c0_27 = arith.constant 0 : index
    %c0_28 = arith.constant 0 : index
    %76 = vector.load %arg8[%c0_27, %c0_28] : memref<1x128xf32, #tpu.memory_space<vmem>>, vector<1x128xf32>
    %77 = vector.broadcast %76 : vector<1x128xf32> to vector<16x128xf32>
    %78 = arith.addf %75, %77 : vector<16x128xf32>
    %c0_29 = arith.constant 0 : index
    %c0_30 = arith.constant 0 : index
    %79 = vector.load %arg9[%c0_29, %c0_30] : memref<16x128xf32, #tpu.memory_space<vmem>>, vector<16x128xf32>
    tpu.vector_store %arg9[%c0_29, %c0_30], %78 {strides = array<i32>} : memref<16x128xf32, #tpu.memory_space<vmem>>, vector<16x128xf32>,
    return
  }
  func.func @transform_0(%arg0: i32, %arg1: memref<1xi32, #tpu.memory_space<smem>>) -> (i32, i32) {
    %c0_i32 = arith.constant 0 : i32
    %c0_i32_0 = arith.constant 0 : i32
    return %arg0, %c0_i32 : i32, i32
  }
  func.func @transform_1(%arg0: i32, %arg1: memref<1xi32, #tpu.memory_space<smem>>) -> (i32, i32) {
    %c0_i32 = arith.constant 0 : i32
    %c0_i32_0 = arith.constant 0 : i32
    %c0_i32_1 = arith.constant 0 : i32
    return %c0_i32, %c0_i32_0 : i32, i32
  }
  func.func @transform_2(%arg0: i32, %arg1: memref<1xi32, #tpu.memory_space<smem>>) -> (i32, i32) {
    %c0_i32 = arith.constant 0 : i32
    %c0_i32_0 = arith.constant 0 : i32
    %c0_i32_1 = arith.constant 0 : i32
    return %c0_i32, %c0_i32_0 : i32, i32
  }
  func.func @transform_3(%arg0: i32, %arg1: memref<1xi32, #tpu.memory_space<smem>>) -> (i32, i32) {
    %c0_i32 = arith.constant 0 : i32
    %c0_i32_0 = arith.constant 0 : i32
    %c0_i32_1 = arith.constant 0 : i32
    return %c0_i32, %c0_i32_0 : i32, i32
  }
  func.func @transform_4(%arg0: i32, %arg1: memref<1xi32, #tpu.memory_space<smem>>) -> (i32, i32) {
    %c0_i32 = arith.constant 0 : i32
    %c0_i32_0 = arith.constant 0 : i32
    %c0_i32_1 = arith.constant 0 : i32
    return %c0_i32, %c0_i32_0 : i32, i32
  }
  func.func @transform_5(%arg0: i32, %arg1: memref<1xi32, #tpu.memory_space<smem>>) -> (i32, i32) {
    %c0_i32 = arith.constant 0 : i32
    %c0_i32_0 = arith.constant 0 : i32
    %c0_i32_1 = arith.constant 0 : i32
    return %c0_i32, %c0_i32_0 : i32, i32
  }
  func.func @transform_6(%arg0: i32, %arg1: memref<1xi32, #tpu.memory_space<smem>>) -> (i32, i32) {
    %c0_i32 = arith.constant 0 : i32
    %c0_i32_0 = arith.constant 0 : i32
    %c0_i32_1 = arith.constant 0 : i32
    return %c0_i32, %c0_i32_0 : i32, i32
  }
  func.func @transform_7(%arg0: i32, %arg1: memref<1xi32, #tpu.memory_space<smem>>) -> (i32, i32) {
    %c0_i32 = arith.constant 0 : i32
    %c0_i32_0 = arith.constant 0 : i32
    return %arg0, %c0_i32 : i32, i32
  }
}

</mosaic_0001>

<llo_original>
// kernel: tpu_custom_call.1
$region0: #{tpu_custom_call.1}
  #allocation0 [shape = 'u32[]', space=smem, size = 0x4, offset = 0x4, fixed_abs, tag = 'smem constant byte address 0x4 - core index']
  #allocation1 [shape = 'u32[72,128]{1,0:T(1,128)}', space=vmem, size = 0x9000, scoped, tag = 'internal scratch']
  #allocation2 [shape = 's32[1]{0}', space=sflag, size = 0x4, scoped, tag = 'scoped memory for tpu_custom_call.1']
  #allocation3 [shape = 's32[1]{0:T(128)S(6)}', space=smem, size = 0x200, scoped, tag = 'prefetched SMEM operand 0']
  %s0 = inlined_call_operand.<no memory space> [shape: s32[1], index: 0, kind: input, shape index: {}]
  %s1 = inlined_call_operand.hbm [shape: bf16[16,32], index: 1, kind: input, shape index: {}]
  %s2 = inlined_call_operand.hbm [shape: bf16[32,128], index: 2, kind: input, shape index: {}]
  %s3 = inlined_call_operand.vmem [shape: f32[1,128], index: 3, kind: input, shape index: {}]
  %s4 = inlined_call_operand.hbm [shape: bf16[128,128], index: 4, kind: input, shape index: {}]
  %s5 = inlined_call_operand.vmem [shape: f32[1,128], index: 5, kind: input, shape index: {}]
  %s6 = inlined_call_operand.hbm [shape: bf16[128,128], index: 6, kind: input, shape index: {}]
  %s7 = inlined_call_operand.vmem [shape: f32[1,128], index: 7, kind: input, shape index: {}]
  %s8 = inlined_call_operand.hbm [shape: f32[16,128], index: 8, kind: output, shape index: {}]
  %s9 = sld [smem:[#allocation0]]
  $region54: #{tpu_custom_call.1} parent=0
    _
  %s11 = ssub.s32 1, %s9
  %s12 = scalar_select 0, %s11, %s9
  %13 = sst [smem:[#allocation3]] %s0
  $region1: #{tpu_custom_call.1} parent=0
    #allocation4 [shape = 'u8[4096]{0}', space=vmem, size = 0x1000, scoped, tag = 'input window, operand 1, single buffered']
    #allocation5 [shape = 's32[1]{0}', space=sflag, size = 0x4, scoped, tag = 'scoped memory for tpu_custom_call.1']
    #allocation6 [shape = 's32[1]{0}', space=sflag, size = 0x4, scoped, tag = 'scoped memory for tpu_custom_call.1']
    #allocation7 [shape = 'u8[8192]{0}', space=vmem, size = 0x2000, scoped, tag = 'input window, operand 2, single buffered']
    #allocation8 [shape = 's32[1]{0}', space=sflag, size = 0x4, scoped, tag = 'scoped memory for tpu_custom_call.1']
    #allocation9 [shape = 'u8[32768]{0}', space=vmem, size = 0x8000, scoped, tag = 'input window, operand 4, single buffered']
    #allocation10 [shape = 'u8[32768]{0}', space=vmem, size = 0x8000, scoped, tag = 'input window, operand 6, single buffered']
    #allocation11 [shape = 's32[1]{0}', space=sflag, size = 0x4, scoped, tag = 'scoped memory for tpu_custom_call.1']
    #allocation12 [shape = 'u8[8192]{0}', space=vmem, size = 0x2000, scoped, tag = 'output window, operand 0, single buffered']
    %14 = vsyncpa [#allocation5], 0
    %15 = vsyncpa [#allocation8], 0
    %16 = vsyncpa [#allocation11], 0
    %17 = vsyncpa [#allocation6], 0
    // Predicated region
    $region2: #{tpu_custom_call.1} parent=1 // pred_check
      _
    $region3: #{tpu_custom_call.1} parent=1 // pred_check_branch
      %19 = sbr.rel (0) target = $region5
    $region4: #{tpu_custom_call.1} parent=1 // pred_region
      %21 = vsyncadd [#allocation5], 0
      %s22 = sshll.u32 %s1, 4
      %s23 = int_to_ptr.hbm [resolvable:$true] %s22
      %s24 = sshll.u32 [#allocation4], 4
      %s25 = int_to_ptr.vmem [resolvable:$true] %s24
      %30 = dma.hbm_to_vmem [thread:$0]  %s23, 128, %s25, [#allocation5], 64, 64, 4
    $region5: #{tpu_custom_call.1} parent=1 // pred_fallthru
      _
    // Predicated region
    $region6: #{tpu_custom_call.1} parent=1 // pred_check
      _
    $region7: #{tpu_custom_call.1} parent=1 // pred_check_branch
      %32 = sbr.rel (0) target = $region9
    $region8: #{tpu_custom_call.1} parent=1 // pred_region
      %34 = vsyncadd [#allocation8], 0
      %s35 = sshll.u32 %s2, 4
      %s36 = int_to_ptr.hbm [resolvable:$true] %s35
      %s37 = sshll.u32 [#allocation7], 4
      %s38 = int_to_ptr.vmem [resolvable:$true] %s37
      %43 = dma.hbm_to_vmem [thread:$0]  %s36, 256, %s38, [#allocation8], 64, 64, 4
    $region9: #{tpu_custom_call.1} parent=1 // pred_fallthru
      _
    // Predicated region
    $region10: #{tpu_custom_call.1} parent=1 // pred_check
      _
    $region11: #{tpu_custom_call.1} parent=1 // pred_check_branch
      %45 = sbr.rel (0) target = $region13
    $region12: #{tpu_custom_call.1} parent=1 // pred_region
      _
    $region13: #{tpu_custom_call.1} parent=1 // pred_fallthru
      _
    // Predicated region
    $region14: #{tpu_custom_call.1} parent=1 // pred_check
      _
    $region15: #{tpu_custom_call.1} parent=1 // pred_check_branch
      %47 = sbr.rel (0) target = $region17
    $region16: #{tpu_custom_call.1} parent=1 // pred_region
      %49 = vsyncadd [#allocation8], 0
      %s50 = sshll.u32 %s4, 4
      %s51 = int_to_ptr.hbm [resolvable:$true] %s50
      %s52 = sshll.u32 [#allocation9], 4
      %s53 = int_to_ptr.vmem [resolvable:$true] %s52
      %58 = dma.hbm_to_vmem [thread:$0]  %s51, 1024, %s53, [#allocation8], 64, 64, 4
    $region17: #{tpu_custom_call.1} parent=1 // pred_fallthru
      _
    // Predicated region
    $region18: #{tpu_custom_call.1} parent=1 // pred_check
      _
    $region19: #{tpu_custom_call.1} parent=1 // pred_check_branch
      %60 = sbr.rel (0) target = $region21
    $region20: #{tpu_custom_call.1} parent=1 // pred_region
      _
    $region21: #{tpu_custom_call.1} parent=1 // pred_fallthru
      _
    // Predicated region
    $region22: #{tpu_custom_call.1} parent=1 // pred_check
      _
    $region23: #{tpu_custom_call.1} parent=1 // pred_check_branch
      %62 = sbr.rel (0) target = $region25
    $region24: #{tpu_custom_call.1} parent=1 // pred_region
      %64 = vsyncadd [#allocation11], 0
      %s65 = sshll.u32 %s6, 4
      %s66 = int_to_ptr.hbm [resolvable:$true] %s65
      %s67 = sshll.u32 [#allocation10], 4
      %s68 = int_to_ptr.vmem [resolvable:$true] %s67
      %73 = dma.hbm_to_vmem [thread:$0]  %s66, 1024, %s68, [#allocation11], 64, 64, 4
    $region25: #{tpu_custom_call.1} parent=1 // pred_fallthru
      _
    // Predicated region
    $region26: #{tpu_custom_call.1} parent=1 // pred_check
      _
    $region27: #{tpu_custom_call.1} parent=1 // pred_check_branch
      %75 = sbr.rel (0) target = $region29
    $region28: #{tpu_custom_call.1} parent=1 // pred_region
      _
    $region29: #{tpu_custom_call.1} parent=1 // pred_fallthru
      _
    // Predicated region
    $region30: #{tpu_custom_call.1} parent=1 // pred_check
      _
    $region31: #{tpu_custom_call.1} parent=1 // pred_check_branch
      %77 = sbr.rel (0) target = $region33
    $region32: #{tpu_custom_call.1} parent=1 // pred_region
      %79 = dma.done [#allocation5], 128
    $region33: #{tpu_custom_call.1} parent=1 // pred_fallthru
      _
    // Predicated region
    $region34: #{tpu_custom_call.1} parent=1 // pred_check
      _
    $region35: #{tpu_custom_call.1} parent=1 // pred_check_branch
      %81 = sbr.rel (0) target = $region37
    $region36: #{tpu_custom_call.1} parent=1 // pred_region
      %83 = dma.done [#allocation8], 256
    $region37: #{tpu_custom_call.1} parent=1 // pred_fallthru
      _
    // Predicated region
    $region38: #{tpu_custom_call.1} parent=1 // pred_check
      _
    $region39: #{tpu_custom_call.1} parent=1 // pred_check_branch
      %85 = sbr.rel (0) target = $region41
    $region40: #{tpu_custom_call.1} parent=1 // pred_region
      %87 = dma.done [#allocation8], 1024
    $region41: #{tpu_custom_call.1} parent=1 // pred_fallthru
      _
    // Predicated region
    $region42: #{tpu_custom_call.1} parent=1 // pred_check
      _
    $region43: #{tpu_custom_call.1} parent=1 // pred_check_branch
      %89 = sbr.rel (0) target = $region45
    $region44: #{tpu_custom_call.1} parent=1 // pred_region
      %91 = dma.done [#allocation11], 1024
    $region45: #{tpu_custom_call.1} parent=1 // pred_fallthru
      _
    %s93 = sld [smem:[#allocation3]]
    %s94 = smul.u32 0, 2654435761
    %s95 = sadd.s32 %s93, %s94
    %v96 = vld [vmem:[#allocation4] sm:$0xf]
    %v97 = vld [vmem:[#allocation4 + $0x4] sm:$0xf]
    %v98 = vld [vmem:[#allocation7] sm:$0xf]
    %v99 = vld [vmem:[#allocation7 + $0x4] sm:$0xf]
    %v100 = vld [vmem:[#allocation7 + $0x8] sm:$0xf]
    %v101 = vld [vmem:[#allocation7 + $0xc] sm:$0xf]
    %v102 = vld [vmem:[%s3] sm:$0x1]
    %v104 = vperm.slane %v102, 0
    %v108 = vunpack.c.l.b16 %v96
    %v109 = vunpack.c.l.b16 %v97
    %v110 = vpack.c.b16 %v109, %v108
    %v115 = vunpack.c.l.b16 %v98
    %v116 = vunpack.c.l.b16 %v99
    %v117 = vunpack.c.l.b16 %v100
    %v118 = vunpack.c.l.b16 %v101
    %v119 = vpack.c.b16 %v116, %v115
    %v120 = vpack.c.b16 %v118, %v117
    %vm123 = vcmask 261120
    %v125 = vsel %vm123, %v110, 0
    %127 = vmatpush.bf16.msra.mxu0 0
    %128 = vmatpush.bf16.msra.mxu0 0
    %129 = vmatpush.bf16.msra.mxu0 0
    %130 = vmatpush.bf16.msra.mxu0 0
    %131 = vmatpush.bf16.msra.mxu0 0
    %132 = vmatpush.bf16.msra.mxu0 0
    %133 = vmatpush.bf16.msra.mxu0 %v120
    %134 = vmatpush.bf16.msra.mxu0 %v119
    %135 = vmatmul.bf16.gmra.mxu0 %v125
    %v136 = vpop.f32.mrf.mxu0
    %v137 = vadd.f32 %v104, %v136
    %v138 = vpop.f32.mrf.mxu0
    %v139 = vadd.f32 %v104, %v138
    %140 = vdwg.mxu0
    %v141 = vmax.f32 %v137, 0.0
    %v142 = vmax.f32 %v139, 0.0
    %v143 = vlaneseq
    %v144 = vshrl.u32 %v143, 7
    %v145 = vadd.s32 %v144, 8
    %v146 = vlaneseq
    %v147 = vand.u32 %v146, 127
    %v148 = vmul.u32 %v144, 128
    %v149 = vmul.u32 %v145, 128
    %v150 = vadd.s32 %v148, %v147
    %v151 = vadd.s32 %v149, %v147
    %s152 = sadd.s32 %s95, 608135816
    %v153 = vstv %s152
    %v154 = vxor.u32 %v150, %v153
    %v155 = vxor.u32 %v151, %v153
    %v156 = vshrl.u32 %v154, 16
    %v157 = vshrl.u32 %v155, 16
    %v158 = vxor.u32 %v154, %v156
    %v159 = vxor.u32 %v155, %v157
    %v160 = vmul.u32 %v158, 2146121005
    %v161 = vmul.u32 %v159, 2146121005
    %v162 = vshrl.u32 %v160, 15
    %v163 = vshrl.u32 %v161, 15
    %v164 = vxor.u32 %v160, %v162
    %v165 = vxor.u32 %v161, %v163
    %v166 = vmul.u32 %v164, 2221713035
    %v167 = vmul.u32 %v165, 2221713035
    %v168 = vshrl.u32 %v166, 16
    %v169 = vshrl.u32 %v167, 16
    %v170 = vxor.u32 %v166, %v168
    %v171 = vxor.u32 %v167, %v169
    %v172 = vadd.s32 %v170, 2147483648
    %vm174 = vcmp.ge.s32.totalorder %v172, 3006477107
    %v175 = vadd.s32 %v171, 2147483648
    %vm177 = vcmp.ge.s32.totalorder %v175, 3006477107
    %v178 = vmul.f32 %v141, 1.25
    %v179 = vmul.f32 %v142, 1.25
    %v180 = vsel %vm174, %v178, 0.0
    %v181 = vsel %vm177, %v179, 0.0
    %v182 = vpack.c.bf16 %v181, %v180
    %v183 = vld [vmem:[#allocation9] sm:$0xf]
    %v184 = vld [vmem:[#allocation9 + $0x4] sm:$0xf]
    %v185 = vld [vmem:[#allocation9 + $0x8] sm:$0xf]
    %v186 = vld [vmem:[#allocation9 + $0xc] sm:$0xf]
    %v187 = vld [vmem:[#allocation9 + $0x10] sm:$0xf]
    %v188 = vld [vmem:[#allocation9 + $0x14] sm:$0xf]
    %v189 = vld [vmem:[#allocation9 + $0x18] sm:$0xf]
    %v190 = vld [vmem:[#allocation9 + $0x1c] sm:$0xf]
    %v191 = vld [vmem:[#allocation9 + $0x20] sm:$0xf]
    %v192 = vld [vmem:[#allocation9 + $0x24] sm:$0xf]
    %v193 = vld [vmem:[#allocation9 + $0x28] sm:$0xf]
    %v194 = vld [vmem:[#allocation9 + $0x2c] sm:$0xf]
    %v195 = vld [vmem:[#allocation9 + $0x30] sm:$0xf]
    %v196 = vld [vmem:[#allocation9 + $0x34] sm:$0xf]
    %v197 = vld [vmem:[#allocation9 + $0x38] sm:$0xf]
    %v198 = vld [vmem:[#allocation9 + $0x3c] sm:$0xf]
    %v199 = vld [vmem:[%s5] sm:$0x1]
    %v201 = vperm.slane %v199, 0
    %v219 = vunpack.c.l.b16 %v183
    %v220 = vunpack.c.l.b16 %v184
    %v221 = vunpack.c.l.b16 %v185
    %v222 = vunpack.c.l.b16 %v186
    %v223 = vunpack.c.l.b16 %v187
    %v224 = vunpack.c.l.b16 %v188
    %v225 = vunpack.c.l.b16 %v189
    %v226 = vunpack.c.l.b16 %v190
    %v227 = vunpack.c.l.b16 %v191
    %v228 = vunpack.c.l.b16 %v192
    %v229 = vunpack.c.l.b16 %v193
    %v230 = vunpack.c.l.b16 %v194
    %v231 = vunpack.c.l.b16 %v195
    %v232 = vunpack.c.l.b16 %v196
    %v233 = vunpack.c.l.b16 %v197
    %v234 = vunpack.c.l.b16 %v198
    %v235 = vpack.c.b16 %v220, %v219
    %v236 = vpack.c.b16 %v222, %v221
    %v237 = vpack.c.b16 %v224, %v223
    %v238 = vpack.c.b16 %v226, %v225
    %v239 = vpack.c.b16 %v228, %v227
    %v240 = vpack.c.b16 %v230, %v229
    %v241 = vpack.c.b16 %v232, %v231
    %v242 = vpack.c.b16 %v234, %v233
    %251 = vmatpush.bf16.msra.mxu0 %v242
    %252 = vmatpush.bf16.msra.mxu0 %v241
    %253 = vmatpush.bf16.msra.mxu0 %v240
    %254 = vmatpush.bf16.msra.mxu0 %v239
    %255 = vmatpush.bf16.msra.mxu0 %v238
    %256 = vmatpush.bf16.msra.mxu0 %v237
    %257 = vmatpush.bf16.msra.mxu0 %v236
    %258 = vmatpush.bf16.msra.mxu0 %v235
    %259 = vmatmul.bf16.gmra.mxu0 %v182
    %v260 = vpop.f32.mrf.mxu0
    %v261 = vadd.f32 %v201, %v260
    %v262 = vpop.f32.mrf.mxu0
    %v263 = vadd.f32 %v201, %v262
    %264 = vdwg.mxu0
    %v265 = vmax.f32 %v261, 0.0
    %v266 = vmax.f32 %v263, 0.0
    %s267 = sadd.s32 %s95, 2242054355
    %v268 = vstv %s267
    %v269 = vxor.u32 %v150, %v268
    %v270 = vxor.u32 %v151, %v268
    %v271 = vshrl.u32 %v269, 16
    %v272 = vshrl.u32 %v270, 16
    %v273 = vxor.u32 %v269, %v271
    %v274 = vxor.u32 %v270, %v272
    %v275 = vmul.u32 %v273, 2146121005
    %v276 = vmul.u32 %v274, 2146121005
    %v277 = vshrl.u32 %v275, 15
    %v278 = vshrl.u32 %v276, 15
    %v279 = vxor.u32 %v275, %v277
    %v280 = vxor.u32 %v276, %v278
    %v281 = vmul.u32 %v279, 2221713035
    %v282 = vmul.u32 %v280, 2221713035
    %v283 = vshrl.u32 %v281, 16
    %v284 = vshrl.u32 %v282, 16
    %v285 = vxor.u32 %v281, %v283
    %v286 = vxor.u32 %v282, %v284
    %v287 = vadd.s32 %v285, 2147483648
    %vm289 = vcmp.ge.s32.totalorder %v287, 0
    %v290 = vadd.s32 %v286, 2147483648
    %vm292 = vcmp.ge.s32.totalorder %v290, 0
    %v293 = vmul.f32 %v265, 2.0
    %v294 = vmul.f32 %v266, 2.0
    %v295 = vsel %vm289, %v293, 0.0
    %v296 = vsel %vm292, %v294, 0.0
    %v297 = vpack.c.bf16 %v296, %v295
    %v298 = vld [vmem:[#allocation10] sm:$0xf]
    %v299 = vld [vmem:[#allocation10 + $0x4] sm:$0xf]
    %v300 = vld [vmem:[#allocation10 + $0x8] sm:$0xf]
    %v301 = vld [vmem:[#allocation10 + $0xc] sm:$0xf]
    %v302 = vld [vmem:[#allocation10 + $0x10] sm:$0xf]
    %v303 = vld [vmem:[#allocation10 + $0x14] sm:$0xf]
    %v304 = vld [vmem:[#allocation10 + $0x18] sm:$0xf]
    %v305 = vld [vmem:[#allocation10 + $0x1c] sm:$0xf]
    %v306 = vld [vmem:[#allocation10 + $0x20] sm:$0xf]
    %v307 = vld [vmem:[#allocation10 + $0x24] sm:$0xf]
    %v308 = vld [vmem:[#allocation10 + $0x28] sm:$0xf]
    %v309 = vld [vmem:[#allocation10 + $0x2c] sm:$0xf]
    %v310 = vld [vmem:[#allocation10 + $0x30] sm:$0xf]
    %v311 = vld [vmem:[#allocation10 + $0x34] sm:$0xf]
    %v312 = vld [vmem:[#allocation10 + $0x38] sm:$0xf]
    %v313 = vld [vmem:[#allocation10 + $0x3c] sm:$0xf]
    %v314 = vld [vmem:[%s7] sm:$0x1]
    %v316 = vperm.slane %v314, 0
    %v334 = vunpack.c.l.b16 %v298
    %v335 = vunpack.c.l.b16 %v299
    %v336 = vunpack.c.l.b16 %v300
    %v337 = vunpack.c.l.b16 %v301
    %v338 = vunpack.c.l.b16 %v302
    %v339 = vunpack.c.l.b16 %v303
    %v340 = vunpack.c.l.b16 %v304
    %v341 = vunpack.c.l.b16 %v305
    %v342 = vunpack.c.l.b16 %v306
    %v343 = vunpack.c.l.b16 %v307
    %v344 = vunpack.c.l.b16 %v308
    %v345 = vunpack.c.l.b16 %v309
    %v346 = vunpack.c.l.b16 %v310
    %v347 = vunpack.c.l.b16 %v311
    %v348 = vunpack.c.l.b16 %v312
    %v349 = vunpack.c.l.b16 %v313
    %v350 = vpack.c.b16 %v335, %v334
    %v351 = vpack.c.b16 %v337, %v336
    %v352 = vpack.c.b16 %v339, %v338
    %v353 = vpack.c.b16 %v341, %v340
    %v354 = vpack.c.b16 %v343, %v342
    %v355 = vpack.c.b16 %v345, %v344
    %v356 = vpack.c.b16 %v347, %v346
    %v357 = vpack.c.b16 %v349, %v348
    %366 = vmatpush.bf16.msra.mxu0 %v357
    %367 = vmatpush.bf16.msra.mxu0 %v356
    %368 = vmatpush.bf16.msra.mxu0 %v355
    %369 = vmatpush.bf16.msra.mxu0 %v354
    %370 = vmatpush.bf16.msra.mxu0 %v353
    %371 = vmatpush.bf16.msra.mxu0 %v352
    %372 = vmatpush.bf16.msra.mxu0 %v351
    %373 = vmatpush.bf16.msra.mxu0 %v350
    %374 = vmatmul.bf16.gmra.mxu0 %v297
    %v375 = vpop.f32.mrf.mxu0
    %v376 = vadd.f32 %v316, %v375
    %v377 = vpop.f32.mrf.mxu0
    %v378 = vadd.f32 %v316, %v377
    %379 = vdwg.mxu0
    %380 = vst [vmem:[#allocation12] sm:$0xff] %v376
    %381 = vst [vmem:[#allocation12 + $0x8] sm:$0xff] %v378
    // Predicated region
    $region46: #{tpu_custom_call.1} parent=1 // pred_check
      _
    $region47: #{tpu_custom_call.1} parent=1 // pred_check_branch
      %383 = sbr.rel (0) target = $region49
    $region48: #{tpu_custom_call.1} parent=1 // pred_region
      %385 = vsyncadd [#allocation6], 0
      %s386 = sshll.u32 [#allocation12], 4
      %s387 = int_to_ptr.vmem [resolvable:$true] %s386
      %s388 = sshll.u32 %s8, 4
      %s389 = int_to_ptr.hbm [resolvable:$true] %s388
      %394 = dma.vmem_to_hbm [thread:$0]  %s387, 256, %s389, [#allocation6], 128, 128, 8
    $region49: #{tpu_custom_call.1} parent=1 // pred_fallthru
      _
    // Predicated region
    $region50: #{tpu_custom_call.1} parent=1 // pred_check
      _
    $region51: #{tpu_custom_call.1} parent=1 // pred_check_branch
      %396 = sbr.rel (0) target = $region53
    $region52: #{tpu_custom_call.1} parent=1 // pred_region
      %398 = dma.done [#allocation6], 256
    $region53: #{tpu_custom_call.1} parent=1 // pred_fallthru
      _
    %399 = vsyncpa [#allocation5], 1
    %400 = vsyncpa [#allocation8], 1
    %401 = vsyncpa [#allocation11], 1
    %402 = vsyncpa [#allocation6], 1

</llo_original>
